<compile_context>
chip_gen: v5e
topology: v5e:2x2
jax: 0.10.0
libtpu: 0.0.40
codegen_flags: <defaults>
</compile_context>

<pallas_src>
import jax
import jax.numpy as jnp
from jax.experimental import pallas as pl
from jax.experimental.pallas import tpu as pltpu

# Small synthetic model dimensions (consistent with a T5 block).
B = 2          # batch
S = 8          # sequence length
D = 32         # hidden size
H = 4          # attention heads
HD = D // H    # head dim
F = 64         # feed-forward inner dim
EPS = 1e-6     # T5 LayerNorm epsilon
M = B * S      # folded row dimension


def t5_block_kernel(x_ref, mask_ref, pb_ref, wqkv_ref, wo_ref,
                    w1_ref, w2_ref, ln1_ref, ln2_ref, out_ref):
    """Single invocation processes the whole (B*S, D) slab; everything in VMEM."""
    x = x_ref[...].astype(jnp.float32)            # (M, D)
    mask = mask_ref[...].astype(jnp.float32)      # (B, 1, S) additive mask
    pb = pb_ref[...].astype(jnp.float32)          # (H, S, S) shared position bias

    # ---- T5 RMSNorm 1 (no mean subtraction, no bias) ----
    var1 = jnp.mean(x * x, axis=-1, keepdims=True)
    xn = x * jax.lax.rsqrt(var1 + EPS) * ln1_ref[...]           # (M, D)

    # ---- QKV projections: one batched dot_general over (3 projections x H heads).
    # Weights are pre-split per head in the wrapper -> (3H, D, HD); the broadcast of
    # xn is a one-off 24 KiB materialization (not inside any loop).
    xn_rep = jnp.broadcast_to(xn[None], (3 * H, M, D))          # (3H, M, D)
    qkv = jnp.einsum('nmd,nde->nme', xn_rep, wqkv_ref[...],
                     preferred_element_type=jnp.float32)        # (3H, M, HD)

    # Leading-dim slices + last-dim-preserving reshapes only (cheap / safe).
    q = qkv[0:H].reshape(H * B, S, HD)                          # (H*B, S, HD)
    k = qkv[H:2 * H].reshape(H * B, S, HD)
    v = qkv[2 * H:3 * H].reshape(H * B, S, HD)

    # ---- attention scores: q k^T + position_bias + mask (T5: no 1/sqrt(d)) ----
    scores = jnp.einsum('nqd,nkd->nqk', q, k,
                        preferred_element_type=jnp.float32)     # (H*B, S, S)
    scores4 = (scores.reshape(H, B, S, S)
               + pb[:, None, :, :]                              # broadcast over B
               + mask[None, :, :, :])                           # broadcast over H, q

    # ---- numerically stable softmax; reciprocal on the (idle) EUP slot ----
    scores4 = scores4 - jnp.max(scores4, axis=-1, keepdims=True)
    e = jnp.exp(scores4)
    p = e * pl.reciprocal(jnp.sum(e, axis=-1, keepdims=True), approx=True)

    # ---- weighted values + output projection (per-head Wo, summed over heads) ----
    o = jnp.einsum('nqk,nkd->nqd', p.reshape(H * B, S, S), v,
                   preferred_element_type=jnp.float32)          # (H*B, S, HD)
    o_h = o.reshape(H, M, HD)                                   # (H, M, HD)
    attn = jnp.sum(
        jnp.einsum('hme,hed->hmd', o_h, wo_ref[...],
                   preferred_element_type=jnp.float32),         # (H, M, D)
        axis=0)                                                 # (M, D)

    h1 = x + attn                                               # residual 1

    # ---- FFN (DenseReluDense) with second RMSNorm ----
    var2 = jnp.mean(h1 * h1, axis=-1, keepdims=True)
    h1n = h1 * jax.lax.rsqrt(var2 + EPS) * ln2_ref[...]
    ff = jnp.maximum(jnp.dot(h1n, w1_ref[...],
                             preferred_element_type=jnp.float32), 0.0)
    ff = jnp.dot(ff, w2_ref[...], preferred_element_type=jnp.float32)

    out_ref[...] = (h1 + ff).astype(out_ref.dtype)


def checkpoint_wrapper_forward(hidden_states, attention_mask, position_bias, params):
    """Equivalent of CheckpointWrapper.forward in eval / non-checkpoint mode:
    runs the wrapped T5 block once and returns its output tuple."""
    wq, wk, wv, wo, w1, w2, ln1, ln2 = params
    Bv, Sv, Dv = hidden_states.shape
    HDv = Dv // H

    # Wrapper-side layout plumbing only (no compute hoisted into XLA):
    #  - fold batch into the matmul row dim
    #  - pre-split projection weights per head so the kernel avoids minor-dim reshapes
    x2d = hidden_states.reshape(Bv * Sv, Dv)

    def per_head(w):                       # (D, D) -> (H, D, HD)
        return w.reshape(Dv, H, HDv).transpose(1, 0, 2)

    wqkv3 = jnp.concatenate([per_head(wq), per_head(wk), per_head(wv)], axis=0)  # (3H, D, HD)
    wo3 = wo.reshape(H, HDv, Dv)                                                 # (H, HD, D)

    vmem = pl.BlockSpec(memory_space=pltpu.MemorySpace.VMEM)
    out2d = pl.pallas_call(
        t5_block_kernel,
        out_shape=jax.ShapeDtypeStruct((Bv * Sv, Dv), hidden_states.dtype),
        in_specs=[vmem] * 9,
        out_specs=vmem,
    )(x2d, attention_mask, position_bias, wqkv3, wo3, w1, w2, ln1, ln2)

    out = out2d.reshape(Bv, Sv, Dv)

    # CheckpointWrapper returns the module's output tuple unchanged (None passthrough
    # / empty-tensor replacement only matters under torch checkpointing, not fwd eval).
    # TODO(synk): torch.utils.checkpoint gradient checkpointing (memory-for-recompute
    # autodiff trick) has no Pallas analogue; forward semantics are identical.
    return (out, position_bias)


def reference_forward(hidden_states, attention_mask, position_bias, params):
    """Pure-JAX reference of the same T5 block, for verification."""
    wq, wk, wv, wo, w1, w2, ln1, ln2 = params
    x = hidden_states.astype(jnp.float32)
    var1 = jnp.mean(x * x, axis=-1, keepdims=True)
    xn = x * jax.lax.rsqrt(var1 + EPS) * ln1[0]
    q = xn @ wq
    k = xn @ wk
    v = xn @ wv
    qh = q.reshape(B, S, H, HD).transpose(0, 2, 1, 3)
    kh = k.reshape(B, S, H, HD).transpose(0, 2, 1, 3)
    vh = v.reshape(B, S, H, HD).transpose(0, 2, 1, 3)
    scores = jnp.einsum("bhqd,bhkd->bhqk", qh, kh)
    scores = scores + position_bias[None] + attention_mask[:, :, None, :]
    p = jax.nn.softmax(scores, axis=-1)
    attn = jnp.einsum("bhqk,bhkd->bhqd", p, vh).transpose(0, 2, 1, 3).reshape(B, S, D)
    attn = attn @ wo
    h1 = x + attn
    var2 = jnp.mean(h1 * h1, axis=-1, keepdims=True)
    h1n = h1 * jax.lax.rsqrt(var2 + EPS) * ln2[0]
    ff = jnp.maximum(h1n @ w1, 0.0) @ w2
    return h1 + ff


if __name__ == "__main__":
    key = jax.random.PRNGKey(0)
    keys = jax.random.split(key, 12)

    hidden_states = jax.random.normal(keys[0], (B, S, D), dtype=jnp.float32)
    # additive attention mask: last two key positions of batch 1 are masked out
    mask_bool = jnp.ones((B, S), dtype=jnp.float32).at[1, -2:].set(0.0)
    attention_mask = ((1.0 - mask_bool) * -1e9).reshape(B, 1, S)
    position_bias = 0.1 * jax.random.normal(keys[1], (H, S, S), dtype=jnp.float32)

    scale = 0.05
    params = (
        scale * jax.random.normal(keys[2], (D, D), dtype=jnp.float32),   # Wq
        scale * jax.random.normal(keys[3], (D, D), dtype=jnp.float32),   # Wk
        scale * jax.random.normal(keys[4], (D, D), dtype=jnp.float32),   # Wv
        scale * jax.random.normal(keys[5], (D, D), dtype=jnp.float32),   # Wo
        scale * jax.random.normal(keys[6], (D, F), dtype=jnp.float32),   # FFN W1
        scale * jax.random.normal(keys[7], (F, D), dtype=jnp.float32),   # FFN W2
        jnp.ones((1, D), dtype=jnp.float32),                             # RMSNorm w1
        jnp.ones((1, D), dtype=jnp.float32),                             # RMSNorm w2
    )

    out, pb_out = checkpoint_wrapper_forward(hidden_states, attention_mask,
                                             position_bias, params)
    out = jax.block_until_ready(out)

    ref = reference_forward(hidden_states, attention_mask, position_bias, params)
    assert out.shape == (B, S, D)
    # tolerance covers pl.reciprocal(approx=True) and the per-head Wo-sum
    # reassociation; both are well below 1e-3 in practice.
    assert jnp.allclose(out, ref, rtol=1e-3, atol=1e-3), "mismatch vs pure-JAX reference"
    assert pb_out is position_bias  # pass-through semantics of the wrapper

    print("KERNEL_OK")
</pallas_src>

<mosaic_0001>
module attributes {stable_mosaic.version = 11 : i64} {
  func.func @t5_block_kernel(%arg0: memref<16x32xf32, #tpu.memory_space<vmem>>, %arg1: memref<2x1x8xf32, #tpu.memory_space<vmem>>, %arg2: memref<4x8x8xf32, #tpu.memory_space<vmem>>, %arg3: memref<12x32x8xf32, #tpu.memory_space<vmem>>, %arg4: memref<4x8x32xf32, #tpu.memory_space<vmem>>, %arg5: memref<32x64xf32, #tpu.memory_space<vmem>>, %arg6: memref<64x32xf32, #tpu.memory_space<vmem>>, %arg7: memref<1x32xf32, #tpu.memory_space<vmem>>, %arg8: memref<1x32xf32, #tpu.memory_space<vmem>>, %arg9: memref<16x32xf32, #tpu.memory_space<vmem>>) attributes {dimension_semantics = [], scalar_prefetch = 0 : i64, scratch_operands = 0 : i64, tpu.core_type = #tpu.core_type<tc>} {
    %c0 = arith.constant 0 : index
    %c0_0 = arith.constant 0 : index
    %0 = vector.load %arg0[%c0, %c0_0] : memref<16x32xf32, #tpu.memory_space<vmem>>, vector<16x32xf32>
    %c0_1 = arith.constant 0 : index
    %c0_2 = arith.constant 0 : index
    %c0_3 = arith.constant 0 : index
    %1 = vector.load %arg1[%c0_1, %c0_2, %c0_3] : memref<2x1x8xf32, #tpu.memory_space<vmem>>, vector<2x1x8xf32>
    %c0_4 = arith.constant 0 : index
    %c0_5 = arith.constant 0 : index
    %c0_6 = arith.constant 0 : index
    %2 = vector.load %arg2[%c0_4, %c0_5, %c0_6] : memref<4x8x8xf32, #tpu.memory_space<vmem>>, vector<4x8x8xf32>
    %3 = arith.mulf %0, %0 : vector<16x32xf32>
    %cst = arith.constant dense<0.000000e+00> : vector<16xf32>
    %4 = vector.multi_reduction <add>, %3, %cst [1] : vector<16x32xf32> to vector<16xf32>
    %5 = vector.shape_cast %4 : vector<16xf32> to vector<16x1xf32>
    %cst_7 = arith.constant 3.200000e+01 : f32
    %6 = vector.broadcast %cst_7 : f32 to vector<16x1xf32>
    %7 = arith.divf %5, %6 : vector<16x1xf32>
    %cst_8 = arith.constant 9.99999997E-7 : f32
    %8 = vector.broadcast %cst_8 : f32 to vector<16x1xf32>
    %9 = arith.addf %7, %8 : vector<16x1xf32>
    %10 = math.rsqrt %9 : vector<16x1xf32>
    %11 = vector.broadcast %10 : vector<16x1xf32> to vector<16x32xf32>
    %12 = arith.mulf %0, %11 : vector<16x32xf32>
    %c0_9 = arith.constant 0 : index
    %c0_10 = arith.constant 0 : index
    %13 = vector.load %arg7[%c0_9, %c0_10] : memref<1x32xf32, #tpu.memory_space<vmem>>, vector<1x32xf32>
    %14 = vector.broadcast %13 : vector<1x32xf32> to vector<16x32xf32>
    %15 = arith.mulf %12, %14 : vector<16x32xf32>
    %16 = vector.shape_cast %15 : vector<16x32xf32> to vector<1x16x32xf32>
    %17 = vector.shape_cast %16 : vector<1x16x32xf32> to vector<1x16x32xf32>
    %18 = vector.broadcast %17 : vector<1x16x32xf32> to vector<12x16x32xf32>
    %c0_11 = arith.constant 0 : index
    %c0_12 = arith.constant 0 : index
    %c0_13 = arith.constant 0 : index
    %19 = vector.load %arg3[%c0_11, %c0_12, %c0_13] : memref<12x32x8xf32, #tpu.memory_space<vmem>>, vector<12x32x8xf32>
    "tpu.trace_start"() <{level = 10 : i32, message = "nmd,nde->nme"}> : () -> ()
    %cst_14 = arith.constant dense<0.000000e+00> : vector<12x16x8xf32>
    %20 = tpu.matmul %18, %19, %cst_14 {dimension_numbers = #tpu.dot_dimension_numbers<[2], [1], [1], [2], [0, 0, 0, 1, 1, 2], [0], [0]>} : vector<12x16x32xf32>, vector<12x32x8xf32>, vector<12x16x8xf32> -> vector<12x16x8xf32>
    "tpu.trace_stop"() : () -> ()
    %21 = vector.extract_strided_slice %20 {offsets = [0, 0, 0], sizes = [4, 16, 8], strides = [1, 1, 1]} : vector<12x16x8xf32> to vector<4x16x8xf32>
    %22 = vector.shape_cast %21 : vector<4x16x8xf32> to vector<8x8x8xf32>
    %23 = vector.extract_strided_slice %20 {offsets = [4, 0, 0], sizes = [4, 16, 8], strides = [1, 1, 1]} : vector<12x16x8xf32> to vector<4x16x8xf32>
    %24 = vector.shape_cast %23 : vector<4x16x8xf32> to vector<8x8x8xf32>
    %25 = vector.extract_strided_slice %20 {offsets = [8, 0, 0], sizes = [4, 16, 8], strides = [1, 1, 1]} : vector<12x16x8xf32> to vector<4x16x8xf32>
    %26 = vector.shape_cast %25 : vector<4x16x8xf32> to vector<8x8x8xf32>
    "tpu.trace_start"() <{level = 10 : i32, message = "nqd,nkd->nqk"}> : () -> ()
    %cst_15 = arith.constant dense<0.000000e+00> : vector<8x8x8xf32>
    %27 = tpu.matmul %22, %24, %cst_15 {dimension_numbers = #tpu.dot_dimension_numbers<[2], [2], [1], [1], [0, 0, 0, 1, 1, 1], [0], [0]>} : vector<8x8x8xf32>, vector<8x8x8xf32>, vector<8x8x8xf32> -> vector<8x8x8xf32>
    "tpu.trace_stop"() : () -> ()
    %28 = vector.shape_cast %27 : vector<8x8x8xf32> to vector<4x2x8x8xf32>
    %29 = vector.shape_cast %2 : vector<4x8x8xf32> to vector<4x1x8x8xf32>
    %30 = vector.broadcast %29 : vector<4x1x8x8xf32> to vector<4x2x8x8xf32>
    %31 = arith.addf %28, %30 : vector<4x2x8x8xf32>
    %32 = vector.shape_cast %1 : vector<2x1x8xf32> to vector<1x2x1x8xf32>
    %33 = vector.broadcast %32 : vector<1x2x1x8xf32> to vector<4x2x8x8xf32>
    %34 = arith.addf %31, %33 : vector<4x2x8x8xf32>
    %cst_16 = arith.constant dense<0xFF800000> : vector<4x2x8xf32>
    %35 = vector.multi_reduction <maximumf>, %34, %cst_16 [3] : vector<4x2x8x8xf32> to vector<4x2x8xf32>
    %36 = vector.shape_cast %35 : vector<4x2x8xf32> to vector<4x2x8x1xf32>
    %37 = vector.broadcast %36 : vector<4x2x8x1xf32> to vector<4x2x8x8xf32>
    %38 = arith.subf %34, %37 : vector<4x2x8x8xf32>
    %39 = math.exp %38 : vector<4x2x8x8xf32>
    %cst_17 = arith.constant dense<0.000000e+00> : vector<4x2x8xf32>
    %40 = vector.multi_reduction <add>, %39, %cst_17 [3] : vector<4x2x8x8xf32> to vector<4x2x8xf32>
    %41 = vector.shape_cast %40 : vector<4x2x8xf32> to vector<4x2x8x1xf32>
    %42 = tpu.reciprocal %41 {approx = true} : vector<4x2x8x1xf32> -> vector<4x2x8x1xf32>
    %43 = vector.broadcast %42 : vector<4x2x8x1xf32> to vector<4x2x8x8xf32>
    %44 = arith.mulf %39, %43 : vector<4x2x8x8xf32>
    %45 = vector.shape_cast %44 : vector<4x2x8x8xf32> to vector<8x8x8xf32>
    "tpu.trace_start"() <{level = 10 : i32, message = "nqk,nkd->nqd"}> : () -> ()
    %cst_18 = arith.constant dense<0.000000e+00> : vector<8x8x8xf32>
    %46 = tpu.matmul %45, %26, %cst_18 {dimension_numbers = #tpu.dot_dimension_numbers<[2], [1], [1], [2], [0, 0, 0, 1, 1, 2], [0], [0]>} : vector<8x8x8xf32>, vector<8x8x8xf32>, vector<8x8x8xf32> -> vector<8x8x8xf32>
    "tpu.trace_stop"() : () -> ()
    %47 = vector.shape_cast %46 : vector<8x8x8xf32> to vector<4x16x8xf32>
    %c0_19 = arith.constant 0 : index
    %c0_20 = arith.constant 0 : index
    %c0_21 = arith.constant 0 : index
    %48 = vector.load %arg4[%c0_19, %c0_20, %c0_21] : memref<4x8x32xf32, #tpu.memory_space<vmem>>, vector<4x8x32xf32>
    "tpu.trace_start"() <{level = 10 : i32, message = "hme,hed->hmd"}> : () -> ()
    %cst_22 = arith.constant dense<0.000000e+00> : vector<4x16x32xf32>
    %49 = tpu.matmul %47, %48, %cst_22 {dimension_numbers = #tpu.dot_dimension_numbers<[2], [1], [1], [2], [0, 0, 0, 1, 1, 2], [0], [0]>} : vector<4x16x8xf32>, vector<4x8x32xf32>, vector<4x16x32xf32> -> vector<4x16x32xf32>
    "tpu.trace_stop"() : () -> ()
    %cst_23 = arith.constant dense<0.000000e+00> : vector<16x32xf32>
    %50 = vector.multi_reduction <add>, %49, %cst_23 [0] : vector<4x16x32xf32> to vector<16x32xf32>
    %51 = arith.addf %0, %50 : vector<16x32xf32>
    %52 = arith.mulf %51, %51 : vector<16x32xf32>
    %cst_24 = arith.constant dense<0.000000e+00> : vector<16xf32>
    %53 = vector.multi_reduction <add>, %52, %cst_24 [1] : vector<16x32xf32> to vector<16xf32>
    %54 = vector.shape_cast %53 : vector<16xf32> to vector<16x1xf32>
    %cst_25 = arith.constant 3.200000e+01 : f32
    %55 = vector.broadcast %cst_25 : f32 to vector<16x1xf32>
    %56 = arith.divf %54, %55 : vector<16x1xf32>
    %cst_26 = arith.constant 9.99999997E-7 : f32
    %57 = vector.broadcast %cst_26 : f32 to vector<16x1xf32>
    %58 = arith.addf %56, %57 : vector<16x1xf32>
    %59 = math.rsqrt %58 : vector<16x1xf32>
    %60 = vector.broadcast %59 : vector<16x1xf32> to vector<16x32xf32>
    %61 = arith.mulf %51, %60 : vector<16x32xf32>
    %c0_27 = arith.constant 0 : index
    %c0_28 = arith.constant 0 : index
    %62 = vector.load %arg8[%c0_27, %c0_28] : memref<1x32xf32, #tpu.memory_space<vmem>>, vector<1x32xf32>
    %63 = vector.broadcast %62 : vector<1x32xf32> to vector<16x32xf32>
    %64 = arith.mulf %61, %63 : vector<16x32xf32>
    %c0_29 = arith.constant 0 : index
    %c0_30 = arith.constant 0 : index
    %65 = vector.load %arg5[%c0_29, %c0_30] : memref<32x64xf32, #tpu.memory_space<vmem>>, vector<32x64xf32>
    %cst_31 = arith.constant dense<0.000000e+00> : vector<16x64xf32>
    %66 = tpu.matmul %64, %65, %cst_31 {dimension_numbers = #tpu.dot_dimension_numbers<[1], [0], [0], [1], [0, 0, 1, 1], [], []>} : vector<16x32xf32>, vector<32x64xf32>, vector<16x64xf32> -> vector<16x64xf32>
    %cst_32 = arith.constant 0.000000e+00 : f32
    %67 = vector.broadcast %cst_32 : f32 to vector<16x64xf32>
    %68 = arith.maximumf %66, %67 : vector<16x64xf32>
    %c0_33 = arith.constant 0 : index
    %c0_34 = arith.constant 0 : index
    %69 = vector.load %arg6[%c0_33, %c0_34] : memref<64x32xf32, #tpu.memory_space<vmem>>, vector<64x32xf32>
    %cst_35 = arith.constant dense<0.000000e+00> : vector<16x32xf32>
    %70 = tpu.matmul %68, %69, %cst_35 {dimension_numbers = #tpu.dot_dimension_numbers<[1], [0], [0], [1], [0, 0, 1, 1], [], []>} : vector<16x64xf32>, vector<64x32xf32>, vector<16x32xf32> -> vector<16x32xf32>
    %71 = arith.addf %51, %70 : vector<16x32xf32>
    %c0_36 = arith.constant 0 : index
    %c0_37 = arith.constant 0 : index
    %72 = vector.load %arg9[%c0_36, %c0_37] : memref<16x32xf32, #tpu.memory_space<vmem>>, vector<16x32xf32>
    tpu.vector_store %arg9[%c0_36, %c0_37], %71 {strides = array<i32>} : memref<16x32xf32, #tpu.memory_space<vmem>>, vector<16x32xf32>,
    return
  }
}

</mosaic_0001>

<llo_original>
// kernel: tpu_custom_call.1
$region0: #{tpu_custom_call.1}
  #allocation0 [shape = 'u32[]', space=smem, size = 0x4, offset = 0x4, fixed_abs, tag = 'smem constant byte address 0x4 - core index']
  #allocation1 [shape = 'u32[72,128]{1,0:T(1,128)}', space=vmem, size = 0x9000, scoped, tag = 'internal scratch']
  %s0 = inlined_call_operand.vmem [shape: f32[16,32], index: 0, kind: input, shape index: {}]
  %s1 = inlined_call_operand.vmem [shape: f32[2,1,8], index: 1, kind: input, shape index: {}]
  %s2 = inlined_call_operand.vmem [shape: f32[4,8,8], index: 2, kind: input, shape index: {}]
  %s3 = inlined_call_operand.vmem [shape: f32[12,32,8], index: 3, kind: input, shape index: {}]
  %s4 = inlined_call_operand.vmem [shape: f32[4,8,32], index: 4, kind: input, shape index: {}]
  %s5 = inlined_call_operand.vmem [shape: f32[32,64], index: 5, kind: input, shape index: {}]
  %s6 = inlined_call_operand.vmem [shape: f32[64,32], index: 6, kind: input, shape index: {}]
  %s7 = inlined_call_operand.vmem [shape: f32[1,32], index: 7, kind: input, shape index: {}]
  %s8 = inlined_call_operand.vmem [shape: f32[1,32], index: 8, kind: input, shape index: {}]
  %s9 = inlined_call_operand.hbm [shape: f32[16,32], index: 9, kind: output, shape index: {}]
  %s10 = sld [smem:[#allocation0]]
  $region46: #{tpu_custom_call.1} parent=0
    _
  %s12 = ssub.s32 1, %s10
  %s13 = scalar_select 0, %s12, %s10
  $region1: #{tpu_custom_call.1} parent=0
    #allocation2 [shape = 'u8[8192]{0}', space=vmem, size = 0x2000, scoped, tag = 'output window, operand 0, single buffered']
    #allocation3 [shape = 's32[1]{0}', space=sflag, size = 0x4, scoped, tag = 'scoped memory for tpu_custom_call.1']
    %14 = vsyncpa [#allocation3], 0
    // Predicated region
    $region2: #{tpu_custom_call.1} parent=1 // pred_check
      _
    $region3: #{tpu_custom_call.1} parent=1 // pred_check_branch
      %16 = sbr.rel (0) target = $region5
    $region4: #{tpu_custom_call.1} parent=1 // pred_region
      _
    $region5: #{tpu_custom_call.1} parent=1 // pred_fallthru
      _
    // Predicated region
    $region6: #{tpu_custom_call.1} parent=1 // pred_check
      _
    $region7: #{tpu_custom_call.1} parent=1 // pred_check_branch
      %18 = sbr.rel (0) target = $region9
    $region8: #{tpu_custom_call.1} parent=1 // pred_region
      _
    $region9: #{tpu_custom_call.1} parent=1 // pred_fallthru
      _
    // Predicated region
    $region10: #{tpu_custom_call.1} parent=1 // pred_check
      _
    $region11: #{tpu_custom_call.1} parent=1 // pred_check_branch
      %20 = sbr.rel (0) target = $region13
    $region12: #{tpu_custom_call.1} parent=1 // pred_region
      _
    $region13: #{tpu_custom_call.1} parent=1 // pred_fallthru
      _
    // Predicated region
    $region14: #{tpu_custom_call.1} parent=1 // pred_check
      _
    $region15: #{tpu_custom_call.1} parent=1 // pred_check_branch
      %22 = sbr.rel (0) target = $region17
    $region16: #{tpu_custom_call.1} parent=1 // pred_region
      _
    $region17: #{tpu_custom_call.1} parent=1 // pred_fallthru
      _
    // Predicated region
    $region18: #{tpu_custom_call.1} parent=1 // pred_check
      _
    $region19: #{tpu_custom_call.1} parent=1 // pred_check_branch
      %24 = sbr.rel (0) target = $region21
    $region20: #{tpu_custom_call.1} parent=1 // pred_region
      _
    $region21: #{tpu_custom_call.1} parent=1 // pred_fallthru
      _
    // Predicated region
    $region22: #{tpu_custom_call.1} parent=1 // pred_check
      _
    $region23: #{tpu_custom_call.1} parent=1 // pred_check_branch
      %26 = sbr.rel (0) target = $region25
    $region24: #{tpu_custom_call.1} parent=1 // pred_region
      _
    $region25: #{tpu_custom_call.1} parent=1 // pred_fallthru
      _
    // Predicated region
    $region26: #{tpu_custom_call.1} parent=1 // pred_check
      _
    $region27: #{tpu_custom_call.1} parent=1 // pred_check_branch
      %28 = sbr.rel (0) target = $region29
    $region28: #{tpu_custom_call.1} parent=1 // pred_region
      _
    $region29: #{tpu_custom_call.1} parent=1 // pred_fallthru
      _
    // Predicated region
    $region30: #{tpu_custom_call.1} parent=1 // pred_check
      _
    $region31: #{tpu_custom_call.1} parent=1 // pred_check_branch
      %30 = sbr.rel (0) target = $region33
    $region32: #{tpu_custom_call.1} parent=1 // pred_region
      _
    $region33: #{tpu_custom_call.1} parent=1 // pred_fallthru
      _
    // Predicated region
    $region34: #{tpu_custom_call.1} parent=1 // pred_check
      _
    $region35: #{tpu_custom_call.1} parent=1 // pred_check_branch
      %32 = sbr.rel (0) target = $region37
    $region36: #{tpu_custom_call.1} parent=1 // pred_region
      _
    $region37: #{tpu_custom_call.1} parent=1 // pred_fallthru
      _
    %v33 = vld [vmem:[%s0] sm:$0xff]
    %v34 = vld [vmem:[%s0 + $0x8] sm:$0xff]
    %v35 = vld [vmem:[%s1] sm:$0x1]
    %v36 = vld [vmem:[%s1 + $0x1] sm:$0x1]
    %v37 = vld [vmem:[%s2] sm:$0xff]
    %v38 = vld [vmem:[%s2 + $0x8] sm:$0xff]
    %v39 = vld [vmem:[%s2 + $0x10] sm:$0xff]
    %v40 = vld [vmem:[%s2 + $0x18] sm:$0xff]
    %v41 = vmul.f32 %v33, %v33
    %v42 = vmul.f32 %v34, %v34
    %vm43 = vcmask 261120
    %v44 = vsel %vm43, %v41, 0.0
    %45 = vadd.xlane.f32.xlu0 %v44
    %v46 = vpop.xlane.xlu0 %45
    %v47 = vsel %vm43, %v42, 0.0
    %48 = vadd.xlane.f32.xlu0 %v47
    %v49 = vpop.xlane.xlu0 %48
    %v50 = vrcp.pop 32.0
    %v51 = vmul.f32 32.0, %v50
    %v52 = vsub.f32 1.0, %v51
    %v53 = vmul.f32 %v50, %v52
    %v54 = vadd.f32 %v50, %v53
    %vm55 = vweird.f32 %v50
    %v56 = vsel %vm55, %v50, %v54
    %v57 = vmul.f32 %v46, %v56
    %v58 = vmul.f32 %v49, %v56
    %v59 = vadd.f32 %v57, 1e-06
    %v60 = vadd.f32 %v58, 1e-06
    %v61 = vrsqrt.pop %v59
    %v62 = vmul.f32 %v61, %v59
    %v63 = vmul.f32 %v62, %v61
    %v64 = vmul.f32 0.5, %v63
    %v65 = vsub.f32 1.5, %v64
    %v66 = vmul.f32 %v61, %v65
    %vm67 = vweird.f32 %v59
    %vm68 = vweird.f32 %v61
    %vm69 = vmor %vm67, %vm68
    %v70 = vsel %vm69, %v61, %v66
    %v71 = vrsqrt.pop %v60
    %v72 = vmul.f32 %v71, %v60
    %v73 = vmul.f32 %v72, %v71
    %v74 = vmul.f32 0.5, %v73
    %v75 = vsub.f32 1.5, %v74
    %v76 = vmul.f32 %v71, %v75
    %vm77 = vweird.f32 %v60
    %vm78 = vweird.f32 %v71
    %vm79 = vmor %vm77, %vm78
    %v80 = vsel %vm79, %v71, %v76
    %v81 = vmul.f32 %v33, %v70
    %v82 = vmul.f32 %v34, %v80
    %v83 = vld [vmem:[%s7] sm:$0x1]
    %v85 = vperm.slane %v83, 0
    %v87 = vmul.f32 %v81, %v85
    %v88 = vmul.f32 %v82, %v85
    %v89 = vld [vmem:[%s3] sm:$0xff]
    %v90 = vld [vmem:[%s3 + $0x8] sm:$0xff]
    %v91 = vld [vmem:[%s3 + $0x10] sm:$0xff]
    %v92 = vld [vmem:[%s3 + $0x18] sm:$0xff]
    %v93 = vld [vmem:[%s3 + $0x20] sm:$0xff]
    %v94 = vld [vmem:[%s3 + $0x28] sm:$0xff]
    %v95 = vld [vmem:[%s3 + $0x30] sm:$0xff]
    %v96 = vld [vmem:[%s3 + $0x38] sm:$0xff]
    %v97 = vld [vmem:[%s3 + $0x40] sm:$0xff]
    %v98 = vld [vmem:[%s3 + $0x48] sm:$0xff]
    %v99 = vld [vmem:[%s3 + $0x50] sm:$0xff]
    %v100 = vld [vmem:[%s3 + $0x58] sm:$0xff]
    %v101 = vld [vmem:[%s3 + $0x60] sm:$0xff]
    %v102 = vld [vmem:[%s3 + $0x68] sm:$0xff]
    %v103 = vld [vmem:[%s3 + $0x70] sm:$0xff]
    %v104 = vld [vmem:[%s3 + $0x78] sm:$0xff]
    %v105 = vld [vmem:[%s3 + $0x80] sm:$0xff]
    %v106 = vld [vmem:[%s3 + $0x88] sm:$0xff]
    %v107 = vld [vmem:[%s3 + $0x90] sm:$0xff]
    %v108 = vld [vmem:[%s3 + $0x98] sm:$0xff]
    %v109 = vld [vmem:[%s3 + $0xa0] sm:$0xff]
    %v110 = vld [vmem:[%s3 + $0xa8] sm:$0xff]
    %v111 = vld [vmem:[%s3 + $0xb0] sm:$0xff]
    %v112 = vld [vmem:[%s3 + $0xb8] sm:$0xff]
    %v113 = vld [vmem:[%s3 + $0xc0] sm:$0xff]
    %v114 = vld [vmem:[%s3 + $0xc8] sm:$0xff]
    %v115 = vld [vmem:[%s3 + $0xd0] sm:$0xff]
    %v116 = vld [vmem:[%s3 + $0xd8] sm:$0xff]
    %v117 = vld [vmem:[%s3 + $0xe0] sm:$0xff]
    %v118 = vld [vmem:[%s3 + $0xe8] sm:$0xff]
    %v119 = vld [vmem:[%s3 + $0xf0] sm:$0xff]
    %v120 = vld [vmem:[%s3 + $0xf8] sm:$0xff]
    %v121 = vld [vmem:[%s3 + $0x100] sm:$0xff]
    %v122 = vld [vmem:[%s3 + $0x108] sm:$0xff]
    %v123 = vld [vmem:[%s3 + $0x110] sm:$0xff]
    %v124 = vld [vmem:[%s3 + $0x118] sm:$0xff]
    %v125 = vld [vmem:[%s3 + $0x120] sm:$0xff]
    %v126 = vld [vmem:[%s3 + $0x128] sm:$0xff]
    %v127 = vld [vmem:[%s3 + $0x130] sm:$0xff]
    %v128 = vld [vmem:[%s3 + $0x138] sm:$0xff]
    %v129 = vld [vmem:[%s3 + $0x140] sm:$0xff]
    %v130 = vld [vmem:[%s3 + $0x148] sm:$0xff]
    %v131 = vld [vmem:[%s3 + $0x150] sm:$0xff]
    %v132 = vld [vmem:[%s3 + $0x158] sm:$0xff]
    %v133 = vld [vmem:[%s3 + $0x160] sm:$0xff]
    %v134 = vld [vmem:[%s3 + $0x168] sm:$0xff]
    %v135 = vld [vmem:[%s3 + $0x170] sm:$0xff]
    %v136 = vld [vmem:[%s3 + $0x178] sm:$0xff]
    %v138 = vsel %vm43, %v87, 0
    %v141 = vsel %vm43, %v88, 0
    %143 = vmatpush.msra.mxu0 0.0
    %144 = vmatpush.msra.mxu0 0.0
    %145 = vmatpush.msra.mxu0 0.0
    %146 = vmatpush.msra.mxu0 0.0
    %147 = vmatpush.msra.mxu0 0.0
    %148 = vmatpush.msra.mxu0 0.0
    %149 = vmatpush.msra.mxu0 0.0
    %150 = vmatpush.msra.mxu0 0.0
    %151 = vmatpush.msra.mxu0 0.0
    %152 = vmatpush.msra.mxu0 0.0
    %153 = vmatpush.msra.mxu0 0.0
    %154 = vmatpush.msra.mxu0 0.0
    %155 = vmatpush.msra.mxu0 %v92
    %156 = vmatpush.msra.mxu0 %v91
    %157 = vmatpush.msra.mxu0 %v90
    %158 = vmatpush.msra.mxu0 %v89
    %159 = vmatmul.f32.gmra.mxu0 %v138
    %v160 = vpop.f32.mrf.mxu0
    %v161 = vadd.f32 0.0, %v160
    %162 = vmatmul.f32.gmra.mxu0 %v141
    %v163 = vpop.f32.mrf.mxu0
    %v164 = vadd.f32 0.0, %v163
    %165 = vdwg.mxu0
    %166 = vmatpush.msra.mxu0 0.0
    %167 = vmatpush.msra.mxu0 0.0
    %168 = vmatpush.msra.mxu0 0.0
    %169 = vmatpush.msra.mxu0 0.0
    %170 = vmatpush.msra.mxu0 0.0
    %171 = vmatpush.msra.mxu0 0.0
    %172 = vmatpush.msra.mxu0 0.0
    %173 = vmatpush.msra.mxu0 0.0
    %174 = vmatpush.msra.mxu0 0.0
    %175 = vmatpush.msra.mxu0 0.0
    %176 = vmatpush.msra.mxu0 0.0
    %177 = vmatpush.msra.mxu0 0.0
    %178 = vmatpush.msra.mxu0 %v96
    %179 = vmatpush.msra.mxu0 %v95
    %180 = vmatpush.msra.mxu0 %v94
    %181 = vmatpush.msra.mxu0 %v93
    %182 = vmatmul.f32.gmra.mxu0 %v138
    %v183 = vpop.f32.mrf.mxu0
    %v184 = vadd.f32 0.0, %v183
    %185 = vmatmul.f32.gmra.mxu0 %v141
    %v186 = vpop.f32.mrf.mxu0
    %v187 = vadd.f32 0.0, %v186
    %188 = vdwg.mxu0
    %189 = vmatpush.msra.mxu0 0.0
    %190 = vmatpush.msra.mxu0 0.0
    %191 = vmatpush.msra.mxu0 0.0
    %192 = vmatpush.msra.mxu0 0.0
    %193 = vmatpush.msra.mxu0 0.0
    %194 = vmatpush.msra.mxu0 0.0
    %195 = vmatpush.msra.mxu0 0.0
    %196 = vmatpush.msra.mxu0 0.0
    %197 = vmatpush.msra.mxu0 0.0
    %198 = vmatpush.msra.mxu0 0.0
    %199 = vmatpush.msra.mxu0 0.0
    %200 = vmatpush.msra.mxu0 0.0
    %201 = vmatpush.msra.mxu0 %v100
    %202 = vmatpush.msra.mxu0 %v99
    %203 = vmatpush.msra.mxu0 %v98
    %204 = vmatpush.msra.mxu0 %v97
    %205 = vmatmul.f32.gmra.mxu0 %v138
    %v206 = vpop.f32.mrf.mxu0
    %v207 = vadd.f32 0.0, %v206
    %208 = vmatmul.f32.gmra.mxu0 %v141
    %v209 = vpop.f32.mrf.mxu0
    %v210 = vadd.f32 0.0, %v209
    %211 = vdwg.mxu0
    %212 = vmatpush.msra.mxu0 0.0
    %213 = vmatpush.msra.mxu0 0.0
    %214 = vmatpush.msra.mxu0 0.0
    %215 = vmatpush.msra.mxu0 0.0
    %216 = vmatpush.msra.mxu0 0.0
    %217 = vmatpush.msra.mxu0 0.0
    %218 = vmatpush.msra.mxu0 0.0
    %219 = vmatpush.msra.mxu0 0.0
    %220 = vmatpush.msra.mxu0 0.0
    %221 = vmatpush.msra.mxu0 0.0
    %222 = vmatpush.msra.mxu0 0.0
    %223 = vmatpush.msra.mxu0 0.0
    %224 = vmatpush.msra.mxu0 %v104
    %225 = vmatpush.msra.mxu0 %v103
    %226 = vmatpush.msra.mxu0 %v102
    %227 = vmatpush.msra.mxu0 %v101
    %228 = vmatmul.f32.gmra.mxu0 %v138
    %v229 = vpop.f32.mrf.mxu0
    %v230 = vadd.f32 0.0, %v229
    %231 = vmatmul.f32.gmra.mxu0 %v141
    %v232 = vpop.f32.mrf.mxu0
    %v233 = vadd.f32 0.0, %v232
    %234 = vdwg.mxu0
    %235 = vmatpush.msra.mxu0 0.0
    %236 = vmatpush.msra.mxu0 0.0
    %237 = vmatpush.msra.mxu0 0.0
    %238 = vmatpush.msra.mxu0 0.0
    %239 = vmatpush.msra.mxu0 0.0
    %240 = vmatpush.msra.mxu0 0.0
    %241 = vmatpush.msra.mxu0 0.0
    %242 = vmatpush.msra.mxu0 0.0
    %243 = vmatpush.msra.mxu0 0.0
    %244 = vmatpush.msra.mxu0 0.0
    %245 = vmatpush.msra.mxu0 0.0
    %246 = vmatpush.msra.mxu0 0.0
    %247 = vmatpush.msra.mxu0 %v108
    %248 = vmatpush.msra.mxu0 %v107
    %249 = vmatpush.msra.mxu0 %v106
    %250 = vmatpush.msra.mxu0 %v105
    %251 = vmatmul.f32.gmra.mxu0 %v138
    %v252 = vpop.f32.mrf.mxu0
    %v253 = vadd.f32 0.0, %v252
    %254 = vmatmul.f32.gmra.mxu0 %v141
    %v255 = vpop.f32.mrf.mxu0
    %v256 = vadd.f32 0.0, %v255
    %257 = vdwg.mxu0
    %258 = vmatpush.msra.mxu0 0.0
    %259 = vmatpush.msra.mxu0 0.0
    %260 = vmatpush.msra.mxu0 0.0
    %261 = vmatpush.msra.mxu0 0.0
    %262 = vmatpush.msra.mxu0 0.0
    %263 = vmatpush.msra.mxu0 0.0
    %264 = vmatpush.msra.mxu0 0.0
    %265 = vmatpush.msra.mxu0 0.0
    %266 = vmatpush.msra.mxu0 0.0
    %267 = vmatpush.msra.mxu0 0.0
    %268 = vmatpush.msra.mxu0 0.0
    %269 = vmatpush.msra.mxu0 0.0
    %270 = vmatpush.msra.mxu0 %v112
    %271 = vmatpush.msra.mxu0 %v111
    %272 = vmatpush.msra.mxu0 %v110
    %273 = vmatpush.msra.mxu0 %v109
    %274 = vmatmul.f32.gmra.mxu0 %v138
    %v275 = vpop.f32.mrf.mxu0
    %v276 = vadd.f32 0.0, %v275
    %277 = vmatmul.f32.gmra.mxu0 %v141
    %v278 = vpop.f32.mrf.mxu0
    %v279 = vadd.f32 0.0, %v278
    %280 = vdwg.mxu0
    %281 = vmatpush.msra.mxu0 0.0
    %282 = vmatpush.msra.mxu0 0.0
    %283 = vmatpush.msra.mxu0 0.0
    %284 = vmatpush.msra.mxu0 0.0
    %285 = vmatpush.msra.mxu0 0.0
    %286 = vmatpush.msra.mxu0 0.0
    %287 = vmatpush.msra.mxu0 0.0
    %288 = vmatpush.msra.mxu0 0.0
    %289 = vmatpush.msra.mxu0 0.0
    %290 = vmatpush.msra.mxu0 0.0
    %291 = vmatpush.msra.mxu0 0.0
    %292 = vmatpush.msra.mxu0 0.0
    %293 = vmatpush.msra.mxu0 %v116
    %294 = vmatpush.msra.mxu0 %v115
    %295 = vmatpush.msra.mxu0 %v114
    %296 = vmatpush.msra.mxu0 %v113
    %297 = vmatmul.f32.gmra.mxu0 %v138
    %v298 = vpop.f32.mrf.mxu0
    %v299 = vadd.f32 0.0, %v298
    %300 = vmatmul.f32.gmra.mxu0 %v141
    %v301 = vpop.f32.mrf.mxu0
    %v302 = vadd.f32 0.0, %v301
    %303 = vdwg.mxu0
    %304 = vmatpush.msra.mxu0 0.0
    %305 = vmatpush.msra.mxu0 0.0
    %306 = vmatpush.msra.mxu0 0.0
    %307 = vmatpush.msra.mxu0 0.0
    %308 = vmatpush.msra.mxu0 0.0
    %309 = vmatpush.msra.mxu0 0.0
    %310 = vmatpush.msra.mxu0 0.0
    %311 = vmatpush.msra.mxu0 0.0
    %312 = vmatpush.msra.mxu0 0.0
    %313 = vmatpush.msra.mxu0 0.0
    %314 = vmatpush.msra.mxu0 0.0
    %315 = vmatpush.msra.mxu0 0.0
    %316 = vmatpush.msra.mxu0 %v120
    %317 = vmatpush.msra.mxu0 %v119
    %318 = vmatpush.msra.mxu0 %v118
    %319 = vmatpush.msra.mxu0 %v117
    %320 = vmatmul.f32.gmra.mxu0 %v138
    %v321 = vpop.f32.mrf.mxu0
    %v322 = vadd.f32 0.0, %v321
    %323 = vmatmul.f32.gmra.mxu0 %v141
    %v324 = vpop.f32.mrf.mxu0
    %v325 = vadd.f32 0.0, %v324
    %326 = vdwg.mxu0
    %327 = vmatpush.msra.mxu0 0.0
    %328 = vmatpush.msra.mxu0 0.0
    %329 = vmatpush.msra.mxu0 0.0
    %330 = vmatpush.msra.mxu0 0.0
    %331 = vmatpush.msra.mxu0 0.0
    %332 = vmatpush.msra.mxu0 0.0
    %333 = vmatpush.msra.mxu0 0.0
    %334 = vmatpush.msra.mxu0 0.0
    %335 = vmatpush.msra.mxu0 0.0
    %336 = vmatpush.msra.mxu0 0.0
    %337 = vmatpush.msra.mxu0 0.0
    %338 = vmatpush.msra.mxu0 0.0
    %339 = vmatpush.msra.mxu0 %v124
    %340 = vmatpush.msra.mxu0 %v123
    %341 = vmatpush.msra.mxu0 %v122
    %342 = vmatpush.msra.mxu0 %v121
    %343 = vmatmul.f32.gmra.mxu0 %v138
    %v344 = vpop.f32.mrf.mxu0
    %v345 = vadd.f32 0.0, %v344
    %346 = vmatmul.f32.gmra.mxu0 %v141
    %v347 = vpop.f32.mrf.mxu0
    %v348 = vadd.f32 0.0, %v347
    %349 = vdwg.mxu0
    %350 = vmatpush.msra.mxu0 0.0
    %351 = vmatpush.msra.mxu0 0.0
    %352 = vmatpush.msra.mxu0 0.0
    %353 = vmatpush.msra.mxu0 0.0
    %354 = vmatpush.msra.mxu0 0.0
    %355 = vmatpush.msra.mxu0 0.0
    %356 = vmatpush.msra.mxu0 0.0
    %357 = vmatpush.msra.mxu0 0.0
    %358 = vmatpush.msra.mxu0 0.0
    %359 = vmatpush.msra.mxu0 0.0
    %360 = vmatpush.msra.mxu0 0.0
    %361 = vmatpush.msra.mxu0 0.0
    %362 = vmatpush.msra.mxu0 %v128
    %363 = vmatpush.msra.mxu0 %v127
    %364 = vmatpush.msra.mxu0 %v126
    %365 = vmatpush.msra.mxu0 %v125
    %366 = vmatmul.f32.gmra.mxu0 %v138
    %v367 = vpop.f32.mrf.mxu0
    %v368 = vadd.f32 0.0, %v367
    %369 = vmatmul.f32.gmra.mxu0 %v141
    %v370 = vpop.f32.mrf.mxu0
    %v371 = vadd.f32 0.0, %v370
    %372 = vdwg.mxu0
    %373 = vmatpush.msra.mxu0 0.0
    %374 = vmatpush.msra.mxu0 0.0
    %375 = vmatpush.msra.mxu0 0.0
    %376 = vmatpush.msra.mxu0 0.0
    %377 = vmatpush.msra.mxu0 0.0
    %378 = vmatpush.msra.mxu0 0.0
    %379 = vmatpush.msra.mxu0 0.0
    %380 = vmatpush.msra.mxu0 0.0
    %381 = vmatpush.msra.mxu0 0.0
    %382 = vmatpush.msra.mxu0 0.0
    %383 = vmatpush.msra.mxu0 0.0
    %384 = vmatpush.msra.mxu0 0.0
    %385 = vmatpush.msra.mxu0 %v132
    %386 = vmatpush.msra.mxu0 %v131
    %387 = vmatpush.msra.mxu0 %v130
    %388 = vmatpush.msra.mxu0 %v129
    %389 = vmatmul.f32.gmra.mxu0 %v138
    %v390 = vpop.f32.mrf.mxu0
    %v391 = vadd.f32 0.0, %v390
    %392 = vmatmul.f32.gmra.mxu0 %v141
    %v393 = vpop.f32.mrf.mxu0
    %v394 = vadd.f32 0.0, %v393
    %395 = vdwg.mxu0
    %396 = vmatpush.msra.mxu0 0.0
    %397 = vmatpush.msra.mxu0 0.0
    %398 = vmatpush.msra.mxu0 0.0
    %399 = vmatpush.msra.mxu0 0.0
    %400 = vmatpush.msra.mxu0 0.0
    %401 = vmatpush.msra.mxu0 0.0
    %402 = vmatpush.msra.mxu0 0.0
    %403 = vmatpush.msra.mxu0 0.0
    %404 = vmatpush.msra.mxu0 0.0
    %405 = vmatpush.msra.mxu0 0.0
    %406 = vmatpush.msra.mxu0 0.0
    %407 = vmatpush.msra.mxu0 0.0
    %408 = vmatpush.msra.mxu0 %v136
    %409 = vmatpush.msra.mxu0 %v135
    %410 = vmatpush.msra.mxu0 %v134
    %411 = vmatpush.msra.mxu0 %v133
    %412 = vmatmul.f32.gmra.mxu0 %v138
    %v413 = vpop.f32.mrf.mxu0
    %v414 = vadd.f32 0.0, %v413
    %415 = vmatmul.f32.gmra.mxu0 %v141
    %v416 = vpop.f32.mrf.mxu0
    %v417 = vadd.f32 0.0, %v416
    %418 = vdwg.mxu0
    %vm419 = vcmask 64512
    %v421 = vsel %vm419, %v161, 0
    %v424 = vsel %vm419, %v253, 0
    %426 = vmatpush.xpose.msra.mxu0 0.0
    %427 = vmatpush.xpose.msra.mxu0 0.0
    %428 = vmatpush.xpose.msra.mxu0 0.0
    %429 = vmatpush.xpose.msra.mxu0 0.0
    %430 = vmatpush.xpose.msra.mxu0 0.0
    %431 = vmatpush.xpose.msra.mxu0 0.0
    %432 = vmatpush.xpose.msra.mxu0 0.0
    %433 = vmatpush.xpose.msra.mxu0 0.0
    %434 = vmatpush.xpose.msra.mxu0 0.0
    %435 = vmatpush.xpose.msra.mxu0 0.0
    %436 = vmatpush.xpose.msra.mxu0 0.0
    %437 = vmatpush.xpose.msra.mxu0 0.0
    %438 = vmatpush.xpose.msra.mxu0 0.0
    %439 = vmatpush.xpose.msra.mxu0 0.0
    %440 = vmatpush.xpose.msra.mxu0 0.0
    %441 = vmatpush.xpose.msra.mxu0 %v424
    %442 = vmatmul.f32.gmra.mxu0 %v421
    %v443 = vpop.f32.mrf.mxu0
    %v444 = vadd.f32 0.0, %v443
    %445 = vdwg.mxu0
    %v447 = vsel %vm419, %v164, 0
    %v450 = vsel %vm419, %v256, 0
    %452 = vmatpush.xpose.msra.mxu0 0.0
    %453 = vmatpush.xpose.msra.mxu0 0.0
    %454 = vmatpush.xpose.msra.mxu0 0.0
    %455 = vmatpush.xpose.msra.mxu0 0.0
    %456 = vmatpush.xpose.msra.mxu0 0.0
    %457 = vmatpush.xpose.msra.mxu0 0.0
    %458 = vmatpush.xpose.msra.mxu0 0.0
    %459 = vmatpush.xpose.msra.mxu0 0.0
    %460 = vmatpush.xpose.msra.mxu0 0.0
    %461 = vmatpush.xpose.msra.mxu0 0.0
    %462 = vmatpush.xpose.msra.mxu0 0.0
    %463 = vmatpush.xpose.msra.mxu0 0.0
    %464 = vmatpush.xpose.msra.mxu0 0.0
    %465 = vmatpush.xpose.msra.mxu0 0.0
    %466 = vmatpush.xpose.msra.mxu0 0.0
    %467 = vmatpush.xpose.msra.mxu0 %v450
    %468 = vmatmul.f32.gmra.mxu0 %v447
    %v469 = vpop.f32.mrf.mxu0
    %v470 = vadd.f32 0.0, %v469
    %471 = vdwg.mxu0
    %v473 = vsel %vm419, %v184, 0
    %v476 = vsel %vm419, %v276, 0
    %478 = vmatpush.xpose.msra.mxu0 0.0
    %479 = vmatpush.xpose.msra.mxu0 0.0
    %480 = vmatpush.xpose.msra.mxu0 0.0
    %481 = vmatpush.xpose.msra.mxu0 0.0
    %482 = vmatpush.xpose.msra.mxu0 0.0
    %483 = vmatpush.xpose.msra.mxu0 0.0
    %484 = vmatpush.xpose.msra.mxu0 0.0
    %485 = vmatpush.xpose.msra.mxu0 0.0
    %486 = vmatpush.xpose.msra.mxu0 0.0
    %487 = vmatpush.xpose.msra.mxu0 0.0
    %488 = vmatpush.xpose.msra.mxu0 0.0
    %489 = vmatpush.xpose.msra.mxu0 0.0
    %490 = vmatpush.xpose.msra.mxu0 0.0
    %491 = vmatpush.xpose.msra.mxu0 0.0
    %492 = vmatpush.xpose.msra.mxu0 0.0
    %493 = vmatpush.xpose.msra.mxu0 %v476
    %494 = vmatmul.f32.gmra.mxu0 %v473
    %v495 = vpop.f32.mrf.mxu0
    %v496 = vadd.f32 0.0, %v495
    %497 = vdwg.mxu0
    %v499 = vsel %vm419, %v187, 0
    %v502 = vsel %vm419, %v279, 0
    %504 = vmatpush.xpose.msra.mxu0 0.0
    %505 = vmatpush.xpose.msra.mxu0 0.0
    %506 = vmatpush.xpose.msra.mxu0 0.0
    %507 = vmatpush.xpose.msra.mxu0 0.0
    %508 = vmatpush.xpose.msra.mxu0 0.0
    %509 = vmatpush.xpose.msra.mxu0 0.0
    %510 = vmatpush.xpose.msra.mxu0 0.0
    %511 = vmatpush.xpose.msra.mxu0 0.0
    %512 = vmatpush.xpose.msra.mxu0 0.0
    %513 = vmatpush.xpose.msra.mxu0 0.0
    %514 = vmatpush.xpose.msra.mxu0 0.0
    %515 = vmatpush.xpose.msra.mxu0 0.0
    %516 = vmatpush.xpose.msra.mxu0 0.0
    %517 = vmatpush.xpose.msra.mxu0 0.0
    %518 = vmatpush.xpose.msra.mxu0 0.0
    %519 = vmatpush.xpose.msra.mxu0 %v502
    %520 = vmatmul.f32.gmra.mxu0 %v499
    %v521 = vpop.f32.mrf.mxu0
    %v522 = vadd.f32 0.0, %v521
    %523 = vdwg.mxu0
    %v525 = vsel %vm419, %v207, 0
    %v528 = vsel %vm419, %v299, 0
    %530 = vmatpush.xpose.msra.mxu0 0.0
    %531 = vmatpush.xpose.msra.mxu0 0.0
    %532 = vmatpush.xpose.msra.mxu0 0.0
    %533 = vmatpush.xpose.msra.mxu0 0.0
    %534 = vmatpush.xpose.msra.mxu0 0.0
    %535 = vmatpush.xpose.msra.mxu0 0.0
    %536 = vmatpush.xpose.msra.mxu0 0.0
    %537 = vmatpush.xpose.msra.mxu0 0.0
    %538 = vmatpush.xpose.msra.mxu0 0.0
    %539 = vmatpush.xpose.msra.mxu0 0.0
    %540 = vmatpush.xpose.msra.mxu0 0.0
    %541 = vmatpush.xpose.msra.mxu0 0.0
    %542 = vmatpush.xpose.msra.mxu0 0.0
    %543 = vmatpush.xpose.msra.mxu0 0.0
    %544 = vmatpush.xpose.msra.mxu0 0.0
    %545 = vmatpush.xpose.msra.mxu0 %v528
    %546 = vmatmul.f32.gmra.mxu0 %v525
    %v547 = vpop.f32.mrf.mxu0
    %v548 = vadd.f32 0.0, %v547
    %549 = vdwg.mxu0
    %v551 = vsel %vm419, %v210, 0
    %v554 = vsel %vm419, %v302, 0
    %556 = vmatpush.xpose.msra.mxu0 0.0
    %557 = vmatpush.xpose.msra.mxu0 0.0
    %558 = vmatpush.xpose.msra.mxu0 0.0
    %559 = vmatpush.xpose.msra.mxu0 0.0
    %560 = vmatpush.xpose.msra.mxu0 0.0
    %561 = vmatpush.xpose.msra.mxu0 0.0
    %562 = vmatpush.xpose.msra.mxu0 0.0
    %563 = vmatpush.xpose.msra.mxu0 0.0
    %564 = vmatpush.xpose.msra.mxu0 0.0
    %565 = vmatpush.xpose.msra.mxu0 0.0
    %566 = vmatpush.xpose.msra.mxu0 0.0
    %567 = vmatpush.xpose.msra.mxu0 0.0
    %568 = vmatpush.xpose.msra.mxu0 0.0
    %569 = vmatpush.xpose.msra.mxu0 0.0
    %570 = vmatpush.xpose.msra.mxu0 0.0
    %571 = vmatpush.xpose.msra.mxu0 %v554
    %572 = vmatmul.f32.gmra.mxu0 %v551
    %v573 = vpop.f32.mrf.mxu0
    %v574 = vadd.f32 0.0, %v573
    %575 = vdwg.mxu0
    %v577 = vsel %vm419, %v230, 0
    %v580 = vsel %vm419, %v322, 0
    %582 = vmatpush.xpose.msra.mxu0 0.0
    %583 = vmatpush.xpose.msra.mxu0 0.0
    %584 = vmatpush.xpose.msra.mxu0 0.0
    %585 = vmatpush.xpose.msra.mxu0 0.0
    %586 = vmatpush.xpose.msra.mxu0 0.0
    %587 = vmatpush.xpose.msra.mxu0 0.0
    %588 = vmatpush.xpose.msra.mxu0 0.0
    %589 = vmatpush.xpose.msra.mxu0 0.0
    %590 = vmatpush.xpose.msra.mxu0 0.0
    %591 = vmatpush.xpose.msra.mxu0 0.0
    %592 = vmatpush.xpose.msra.mxu0 0.0
    %593 = vmatpush.xpose.msra.mxu0 0.0
    %594 = vmatpush.xpose.msra.mxu0 0.0
    %595 = vmatpush.xpose.msra.mxu0 0.0
    %596 = vmatpush.xpose.msra.mxu0 0.0
    %597 = vmatpush.xpose.msra.mxu0 %v580
    %598 = vmatmul.f32.gmra.mxu0 %v577
    %v599 = vpop.f32.mrf.mxu0
    %v600 = vadd.f32 0.0, %v599
    %601 = vdwg.mxu0
    %v603 = vsel %vm419, %v233, 0
    %v606 = vsel %vm419, %v325, 0
    %608 = vmatpush.xpose.msra.mxu0 0.0
    %609 = vmatpush.xpose.msra.mxu0 0.0
    %610 = vmatpush.xpose.msra.mxu0 0.0
    %611 = vmatpush.xpose.msra.mxu0 0.0
    %612 = vmatpush.xpose.msra.mxu0 0.0
    %613 = vmatpush.xpose.msra.mxu0 0.0
    %614 = vmatpush.xpose.msra.mxu0 0.0
    %615 = vmatpush.xpose.msra.mxu0 0.0
    %616 = vmatpush.xpose.msra.mxu0 0.0
    %617 = vmatpush.xpose.msra.mxu0 0.0
    %618 = vmatpush.xpose.msra.mxu0 0.0
    %619 = vmatpush.xpose.msra.mxu0 0.0
    %620 = vmatpush.xpose.msra.mxu0 0.0
    %621 = vmatpush.xpose.msra.mxu0 0.0
    %622 = vmatpush.xpose.msra.mxu0 0.0
    %623 = vmatpush.xpose.msra.mxu0 %v606
    %624 = vmatmul.f32.gmra.mxu0 %v603
    %v625 = vpop.f32.mrf.mxu0
    %v626 = vadd.f32 0.0, %v625
    %627 = vdwg.mxu0
    %v628 = vadd.f32 %v444, %v37
    %v629 = vadd.f32 %v470, %v37
    %v630 = vadd.f32 %v496, %v38
    %v631 = vadd.f32 %v522, %v38
    %v632 = vadd.f32 %v548, %v39
    %v633 = vadd.f32 %v574, %v39
    %v634 = vadd.f32 %v600, %v40
    %v635 = vadd.f32 %v626, %v40
    %v638 = vperm.slane %v35, 0
    %v639 = vperm.slane %v36, 0
    %v642 = vadd.f32 %v628, %v638
    %v643 = vadd.f32 %v629, %v639
    %v644 = vadd.f32 %v630, %v638
    %v645 = vadd.f32 %v631, %v639
    %v646 = vadd.f32 %v632, %v638
    %v647 = vadd.f32 %v633, %v639
    %v648 = vadd.f32 %v634, %v638
    %v649 = vadd.f32 %v635, %v639
    %v650 = vsel %vm419, %v642, -inf
    %651 = vmax.xlane.f32.xlu0 %v650
    %v652 = vpop.xlane.xlu0 %651
    %v653 = vsel %vm419, %v643, -inf
    %654 = vmax.xlane.f32.xlu0 %v653
    %v655 = vpop.xlane.xlu0 %654
    %v656 = vsel %vm419, %v644, -inf
    %657 = vmax.xlane.f32.xlu0 %v656
    %v658 = vpop.xlane.xlu0 %657
    %v659 = vsel %vm419, %v645, -inf
    %660 = vmax.xlane.f32.xlu0 %v659
    %v661 = vpop.xlane.xlu0 %660
    %v662 = vsel %vm419, %v646, -inf
    %663 = vmax.xlane.f32.xlu0 %v662
    %v664 = vpop.xlane.xlu0 %663
    %v665 = vsel %vm419, %v647, -inf
    %666 = vmax.xlane.f32.xlu0 %v665
    %v667 = vpop.xlane.xlu0 %666
    %v668 = vsel %vm419, %v648, -inf
    %669 = vmax.xlane.f32.xlu0 %v668
    %v670 = vpop.xlane.xlu0 %669
    %v671 = vsel %vm419, %v649, -inf
    %672 = vmax.xlane.f32.xlu0 %v671
    %v673 = vpop.xlane.xlu0 %672
    %v674 = vsub.f32 %v642, %v652
    %v675 = vsub.f32 %v643, %v655
    %v676 = vsub.f32 %v644, %v658
    %v677 = vsub.f32 %v645, %v661
    %v678 = vsub.f32 %v646, %v664
    %v679 = vsub.f32 %v647, %v667
    %v680 = vsub.f32 %v648, %v670
    %v681 = vsub.f32 %v649, %v673
    %v682 = vmul.f32 %v674, 1.442695
    %v683 = vpow.pop %v682
    %v684 = vmul.f32 %v675, 1.442695
    %v685 = vpow.pop %v684
    %v686 = vmul.f32 %v676, 1.442695
    %v687 = vpow.pop %v686
    %v688 = vmul.f32 %v677, 1.442695
    %v689 = vpow.pop %v688
    %v690 = vmul.f32 %v678, 1.442695
    %v691 = vpow.pop %v690
    %v692 = vmul.f32 %v679, 1.442695
    %v693 = vpow.pop %v692
    %v694 = vmul.f32 %v680, 1.442695
    %v695 = vpow.pop %v694
    %v696 = vmul.f32 %v681, 1.442695
    %v697 = vpow.pop %v696
    %v698 = vsel %vm419, %v683, 0.0
    %699 = vadd.xlane.f32.xlu0 %v698
    %v700 = vpop.xlane.xlu0 %699
    %v701 = vsel %vm419, %v685, 0.0
    %702 = vadd.xlane.f32.xlu0 %v701
    %v703 = vpop.xlane.xlu0 %702
    %v704 = vsel %vm419, %v687, 0.0
    %705 = vadd.xlane.f32.xlu0 %v704
    %v706 = vpop.xlane.xlu0 %705
    %v707 = vsel %vm419, %v689, 0.0
    %708 = vadd.xlane.f32.xlu0 %v707
    %v709 = vpop.xlane.xlu0 %708
    %v710 = vsel %vm419, %v691, 0.0
    %711 = vadd.xlane.f32.xlu0 %v710
    %v712 = vpop.xlane.xlu0 %711
    %v713 = vsel %vm419, %v693, 0.0
    %714 = vadd.xlane.f32.xlu0 %v713
    %v715 = vpop.xlane.xlu0 %714
    %v716 = vsel %vm419, %v695, 0.0
    %717 = vadd.xlane.f32.xlu0 %v716
    %v718 = vpop.xlane.xlu0 %717
    %v719 = vsel %vm419, %v697, 0.0
    %720 = vadd.xlane.f32.xlu0 %v719
    %v721 = vpop.xlane.xlu0 %720
    %v722 = vrcp.pop %v700
    %v723 = vrcp.pop %v703
    %v724 = vrcp.pop %v706
    %v725 = vrcp.pop %v709
    %v726 = vrcp.pop %v712
    %v727 = vrcp.pop %v715
    %v728 = vrcp.pop %v718
    %v729 = vrcp.pop %v721
    %v730 = vmul.f32 %v683, %v722
    %v731 = vmul.f32 %v685, %v723
    %v732 = vmul.f32 %v687, %v724
    %v733 = vmul.f32 %v689, %v725
    %v734 = vmul.f32 %v691, %v726
    %v735 = vmul.f32 %v693, %v727
    %v736 = vmul.f32 %v695, %v728
    %v737 = vmul.f32 %v697, %v729
    %v739 = vsel %vm419, %v730, 0
    %741 = vmatpush.msra.mxu0 0.0
    %742 = vmatpush.msra.mxu0 0.0
    %743 = vmatpush.msra.mxu0 0.0
    %744 = vmatpush.msra.mxu0 0.0
    %745 = vmatpush.msra.mxu0 0.0
    %746 = vmatpush.msra.mxu0 0.0
    %747 = vmatpush.msra.mxu0 0.0
    %748 = vmatpush.msra.mxu0 0.0
    %749 = vmatpush.msra.mxu0 0.0
    %750 = vmatpush.msra.mxu0 0.0
    %751 = vmatpush.msra.mxu0 0.0
    %752 = vmatpush.msra.mxu0 0.0
    %753 = vmatpush.msra.mxu0 0.0
    %754 = vmatpush.msra.mxu0 0.0
    %755 = vmatpush.msra.mxu0 0.0
    %756 = vmatpush.msra.mxu0 %v345
    %757 = vmatmul.f32.gmra.mxu0 %v739
    %v758 = vpop.f32.mrf.mxu0
    %v759 = vadd.f32 0.0, %v758
    %760 = vdwg.mxu0
    %v762 = vsel %vm419, %v731, 0
    %764 = vmatpush.msra.mxu0 0.0
    %765 = vmatpush.msra.mxu0 0.0
    %766 = vmatpush.msra.mxu0 0.0
    %767 = vmatpush.msra.mxu0 0.0
    %768 = vmatpush.msra.mxu0 0.0
    %769 = vmatpush.msra.mxu0 0.0
    %770 = vmatpush.msra.mxu0 0.0
    %771 = vmatpush.msra.mxu0 0.0
    %772 = vmatpush.msra.mxu0 0.0
    %773 = vmatpush.msra.mxu0 0.0
    %774 = vmatpush.msra.mxu0 0.0
    %775 = vmatpush.msra.mxu0 0.0
    %776 = vmatpush.msra.mxu0 0.0
    %777 = vmatpush.msra.mxu0 0.0
    %778 = vmatpush.msra.mxu0 0.0
    %779 = vmatpush.msra.mxu0 %v348
    %780 = vmatmul.f32.gmra.mxu0 %v762
    %v781 = vpop.f32.mrf.mxu0
    %v782 = vadd.f32 0.0, %v781
    %783 = vdwg.mxu0
    %v785 = vsel %vm419, %v732, 0
    %787 = vmatpush.msra.mxu0 0.0
    %788 = vmatpush.msra.mxu0 0.0
    %789 = vmatpush.msra.mxu0 0.0
    %790 = vmatpush.msra.mxu0 0.0
    %791 = vmatpush.msra.mxu0 0.0
    %792 = vmatpush.msra.mxu0 0.0
    %793 = vmatpush.msra.mxu0 0.0
    %794 = vmatpush.msra.mxu0 0.0
    %795 = vmatpush.msra.mxu0 0.0
    %796 = vmatpush.msra.mxu0 0.0
    %797 = vmatpush.msra.mxu0 0.0
    %798 = vmatpush.msra.mxu0 0.0
    %799 = vmatpush.msra.mxu0 0.0
    %800 = vmatpush.msra.mxu0 0.0
    %801 = vmatpush.msra.mxu0 0.0
    %802 = vmatpush.msra.mxu0 %v368
    %803 = vmatmul.f32.gmra.mxu0 %v785
    %v804 = vpop.f32.mrf.mxu0
    %v805 = vadd.f32 0.0, %v804
    %806 = vdwg.mxu0
    %v808 = vsel %vm419, %v733, 0
    %810 = vmatpush.msra.mxu0 0.0
    %811 = vmatpush.msra.mxu0 0.0
    %812 = vmatpush.msra.mxu0 0.0
    %813 = vmatpush.msra.mxu0 0.0
    %814 = vmatpush.msra.mxu0 0.0
    %815 = vmatpush.msra.mxu0 0.0
    %816 = vmatpush.msra.mxu0 0.0
    %817 = vmatpush.msra.mxu0 0.0
    %818 = vmatpush.msra.mxu0 0.0
    %819 = vmatpush.msra.mxu0 0.0
    %820 = vmatpush.msra.mxu0 0.0
    %821 = vmatpush.msra.mxu0 0.0
    %822 = vmatpush.msra.mxu0 0.0
    %823 = vmatpush.msra.mxu0 0.0
    %824 = vmatpush.msra.mxu0 0.0
    %825 = vmatpush.msra.mxu0 %v371
    %826 = vmatmul.f32.gmra.mxu0 %v808
    %v827 = vpop.f32.mrf.mxu0
    %v828 = vadd.f32 0.0, %v827
    %829 = vdwg.mxu0
    %v831 = vsel %vm419, %v734, 0
    %833 = vmatpush.msra.mxu0 0.0
    %834 = vmatpush.msra.mxu0 0.0
    %835 = vmatpush.msra.mxu0 0.0
    %836 = vmatpush.msra.mxu0 0.0
    %837 = vmatpush.msra.mxu0 0.0
    %838 = vmatpush.msra.mxu0 0.0
    %839 = vmatpush.msra.mxu0 0.0
    %840 = vmatpush.msra.mxu0 0.0
    %841 = vmatpush.msra.mxu0 0.0
    %842 = vmatpush.msra.mxu0 0.0
    %843 = vmatpush.msra.mxu0 0.0
    %844 = vmatpush.msra.mxu0 0.0
    %845 = vmatpush.msra.mxu0 0.0
    %846 = vmatpush.msra.mxu0 0.0
    %847 = vmatpush.msra.mxu0 0.0
    %848 = vmatpush.msra.mxu0 %v391
    %849 = vmatmul.f32.gmra.mxu0 %v831
    %v850 = vpop.f32.mrf.mxu0
    %v851 = vadd.f32 0.0, %v850
    %852 = vdwg.mxu0
    %v854 = vsel %vm419, %v735, 0
    %856 = vmatpush.msra.mxu0 0.0
    %857 = vmatpush.msra.mxu0 0.0
    %858 = vmatpush.msra.mxu0 0.0
    %859 = vmatpush.msra.mxu0 0.0
    %860 = vmatpush.msra.mxu0 0.0
    %861 = vmatpush.msra.mxu0 0.0
    %862 = vmatpush.msra.mxu0 0.0
    %863 = vmatpush.msra.mxu0 0.0
    %864 = vmatpush.msra.mxu0 0.0
    %865 = vmatpush.msra.mxu0 0.0
    %866 = vmatpush.msra.mxu0 0.0
    %867 = vmatpush.msra.mxu0 0.0
    %868 = vmatpush.msra.mxu0 0.0
    %869 = vmatpush.msra.mxu0 0.0
    %870 = vmatpush.msra.mxu0 0.0
    %871 = vmatpush.msra.mxu0 %v394
    %872 = vmatmul.f32.gmra.mxu0 %v854
    %v873 = vpop.f32.mrf.mxu0
    %v874 = vadd.f32 0.0, %v873
    %875 = vdwg.mxu0
    %v877 = vsel %vm419, %v736, 0
    %879 = vmatpush.msra.mxu0 0.0
    %880 = vmatpush.msra.mxu0 0.0
    %881 = vmatpush.msra.mxu0 0.0
    %882 = vmatpush.msra.mxu0 0.0
    %883 = vmatpush.msra.mxu0 0.0
    %884 = vmatpush.msra.mxu0 0.0
    %885 = vmatpush.msra.mxu0 0.0
    %886 = vmatpush.msra.mxu0 0.0
    %887 = vmatpush.msra.mxu0 0.0
    %888 = vmatpush.msra.mxu0 0.0
    %889 = vmatpush.msra.mxu0 0.0
    %890 = vmatpush.msra.mxu0 0.0
    %891 = vmatpush.msra.mxu0 0.0
    %892 = vmatpush.msra.mxu0 0.0
    %893 = vmatpush.msra.mxu0 0.0
    %894 = vmatpush.msra.mxu0 %v414
    %895 = vmatmul.f32.gmra.mxu0 %v877
    %v896 = vpop.f32.mrf.mxu0
    %v897 = vadd.f32 0.0, %v896
    %898 = vdwg.mxu0
    %v900 = vsel %vm419, %v737, 0
    %902 = vmatpush.msra.mxu0 0.0
    %903 = vmatpush.msra.mxu0 0.0
    %904 = vmatpush.msra.mxu0 0.0
    %905 = vmatpush.msra.mxu0 0.0
    %906 = vmatpush.msra.mxu0 0.0
    %907 = vmatpush.msra.mxu0 0.0
    %908 = vmatpush.msra.mxu0 0.0
    %909 = vmatpush.msra.mxu0 0.0
    %910 = vmatpush.msra.mxu0 0.0
    %911 = vmatpush.msra.mxu0 0.0
    %912 = vmatpush.msra.mxu0 0.0
    %913 = vmatpush.msra.mxu0 0.0
    %914 = vmatpush.msra.mxu0 0.0
    %915 = vmatpush.msra.mxu0 0.0
    %916 = vmatpush.msra.mxu0 0.0
    %917 = vmatpush.msra.mxu0 %v417
    %918 = vmatmul.f32.gmra.mxu0 %v900
    %v919 = vpop.f32.mrf.mxu0
    %v920 = vadd.f32 0.0, %v919
    %921 = vdwg.mxu0
    %v922 = vld [vmem:[%s4] sm:$0xff]
    %v923 = vld [vmem:[%s4 + $0x8] sm:$0xff]
    %v924 = vld [vmem:[%s4 + $0x10] sm:$0xff]
    %v925 = vld [vmem:[%s4 + $0x18] sm:$0xff]
    %v927 = vsel %vm419, %v759, 0
    %v930 = vsel %vm419, %v782, 0
    %932 = vmatpush.msra.mxu0 0.0
    %933 = vmatpush.msra.mxu0 0.0
    %934 = vmatpush.msra.mxu0 0.0
    %935 = vmatpush.msra.mxu0 0.0
    %936 = vmatpush.msra.mxu0 0.0
    %937 = vmatpush.msra.mxu0 0.0
    %938 = vmatpush.msra.mxu0 0.0
    %939 = vmatpush.msra.mxu0 0.0
    %940 = vmatpush.msra.mxu0 0.0
    %941 = vmatpush.msra.mxu0 0.0
    %942 = vmatpush.msra.mxu0 0.0
    %943 = vmatpush.msra.mxu0 0.0
    %944 = vmatpush.msra.mxu0 0.0
    %945 = vmatpush.msra.mxu0 0.0
    %946 = vmatpush.msra.mxu0 0.0
    %947 = vmatpush.msra.mxu0 %v922
    %948 = vmatmul.f32.gmra.mxu0 %v927
    %v949 = vpop.f32.mrf.mxu0
    %v950 = vadd.f32 0.0, %v949
    %951 = vmatmul.f32.gmra.mxu0 %v930
    %v952 = vpop.f32.mrf.mxu0
    %v953 = vadd.f32 0.0, %v952
    %954 = vdwg.mxu0
    %v956 = vsel %vm419, %v805, 0
    %v959 = vsel %vm419, %v828, 0
    %961 = vmatpush.msra.mxu0 0.0
    %962 = vmatpush.msra.mxu0 0.0
    %963 = vmatpush.msra.mxu0 0.0
    %964 = vmatpush.msra.mxu0 0.0
    %965 = vmatpush.msra.mxu0 0.0
    %966 = vmatpush.msra.mxu0 0.0
    %967 = vmatpush.msra.mxu0 0.0
    %968 = vmatpush.msra.mxu0 0.0
    %969 = vmatpush.msra.mxu0 0.0
    %970 = vmatpush.msra.mxu0 0.0
    %971 = vmatpush.msra.mxu0 0.0
    %972 = vmatpush.msra.mxu0 0.0
    %973 = vmatpush.msra.mxu0 0.0
    %974 = vmatpush.msra.mxu0 0.0
    %975 = vmatpush.msra.mxu0 0.0
    %976 = vmatpush.msra.mxu0 %v923
    %977 = vmatmul.f32.gmra.mxu0 %v956
    %v978 = vpop.f32.mrf.mxu0
    %v979 = vadd.f32 0.0, %v978
    %980 = vmatmul.f32.gmra.mxu0 %v959
    %v981 = vpop.f32.mrf.mxu0
    %v982 = vadd.f32 0.0, %v981
    %983 = vdwg.mxu0
    %v985 = vsel %vm419, %v851, 0
    %v988 = vsel %vm419, %v874, 0
    %990 = vmatpush.msra.mxu0 0.0
    %991 = vmatpush.msra.mxu0 0.0
    %992 = vmatpush.msra.mxu0 0.0
    %993 = vmatpush.msra.mxu0 0.0
    %994 = vmatpush.msra.mxu0 0.0
    %995 = vmatpush.msra.mxu0 0.0
    %996 = vmatpush.msra.mxu0 0.0
    %997 = vmatpush.msra.mxu0 0.0
    %998 = vmatpush.msra.mxu0 0.0
    %999 = vmatpush.msra.mxu0 0.0
    %1000 = vmatpush.msra.mxu0 0.0
    %1001 = vmatpush.msra.mxu0 0.0
    %1002 = vmatpush.msra.mxu0 0.0
    %1003 = vmatpush.msra.mxu0 0.0
    %1004 = vmatpush.msra.mxu0 0.0
    %1005 = vmatpush.msra.mxu0 %v924
    %1006 = vmatmul.f32.gmra.mxu0 %v985
    %v1007 = vpop.f32.mrf.mxu0
    %v1008 = vadd.f32 0.0, %v1007
    %1009 = vmatmul.f32.gmra.mxu0 %v988
    %v1010 = vpop.f32.mrf.mxu0
    %v1011 = vadd.f32 0.0, %v1010
    %1012 = vdwg.mxu0
    %v1014 = vsel %vm419, %v897, 0
    %v1017 = vsel %vm419, %v920, 0
    %1019 = vmatpush.msra.mxu0 0.0
    %1020 = vmatpush.msra.mxu0 0.0
    %1021 = vmatpush.msra.mxu0 0.0
    %1022 = vmatpush.msra.mxu0 0.0
    %1023 = vmatpush.msra.mxu0 0.0
    %1024 = vmatpush.msra.mxu0 0.0
    %1025 = vmatpush.msra.mxu0 0.0
    %1026 = vmatpush.msra.mxu0 0.0
    %1027 = vmatpush.msra.mxu0 0.0
    %1028 = vmatpush.msra.mxu0 0.0
    %1029 = vmatpush.msra.mxu0 0.0
    %1030 = vmatpush.msra.mxu0 0.0
    %1031 = vmatpush.msra.mxu0 0.0
    %1032 = vmatpush.msra.mxu0 0.0
    %1033 = vmatpush.msra.mxu0 0.0
    %1034 = vmatpush.msra.mxu0 %v925
    %1035 = vmatmul.f32.gmra.mxu0 %v1014
    %v1036 = vpop.f32.mrf.mxu0
    %v1037 = vadd.f32 0.0, %v1036
    %1038 = vmatmul.f32.gmra.mxu0 %v1017
    %v1039 = vpop.f32.mrf.mxu0
    %v1040 = vadd.f32 0.0, %v1039
    %1041 = vdwg.mxu0
    %v1042 = vsel %vm43, %v950, 0.0
    %v1043 = vsel %vm43, %v979, 0.0
    %v1044 = vadd.f32 %v1042, %v1043
    %v1045 = vsel %vm43, %v1008, 0.0
    %v1046 = vadd.f32 %v1044, %v1045
    %v1047 = vsel %vm43, %v1037, 0.0
    %v1048 = vadd.f32 %v1046, %v1047
    %v1049 = vsel %vm43, %v953, 0.0
    %v1050 = vsel %vm43, %v982, 0.0
    %v1051 = vadd.f32 %v1049, %v1050
    %v1052 = vsel %vm43, %v1011, 0.0
    %v1053 = vadd.f32 %v1051, %v1052
    %v1054 = vsel %vm43, %v1040, 0.0
    %v1055 = vadd.f32 %v1053, %v1054
    %v1056 = vadd.f32 %v33, %v1048
    %v1057 = vadd.f32 %v34, %v1055
    %v1058 = vmul.f32 %v1056, %v1056
    %v1059 = vmul.f32 %v1057, %v1057
    %v1060 = vsel %vm43, %v1058, 0.0
    %1061 = vadd.xlane.f32.xlu0 %v1060
    %v1062 = vpop.xlane.xlu0 %1061
    %v1063 = vsel %vm43, %v1059, 0.0
    %1064 = vadd.xlane.f32.xlu0 %v1063
    %v1065 = vpop.xlane.xlu0 %1064
    %v1066 = vmul.f32 %v1062, %v56
    %v1067 = vmul.f32 %v1065, %v56
    %v1068 = vadd.f32 %v1066, 1e-06
    %v1069 = vadd.f32 %v1067, 1e-06
    %v1070 = vrsqrt.pop %v1068
    %v1071 = vmul.f32 %v1070, %v1068
    %v1072 = vmul.f32 %v1071, %v1070
    %v1073 = vmul.f32 0.5, %v1072
    %v1074 = vsub.f32 1.5, %v1073
    %v1075 = vmul.f32 %v1070, %v1074
    %vm1076 = vweird.f32 %v1068
    %vm1077 = vweird.f32 %v1070
    %vm1078 = vmor %vm1076, %vm1077
    %v1079 = vsel %vm1078, %v1070, %v1075
    %v1080 = vrsqrt.pop %v1069
    %v1081 = vmul.f32 %v1080, %v1069
    %v1082 = vmul.f32 %v1081, %v1080
    %v1083 = vmul.f32 0.5, %v1082
    %v1084 = vsub.f32 1.5, %v1083
    %v1085 = vmul.f32 %v1080, %v1084
    %vm1086 = vweird.f32 %v1069
    %vm1087 = vweird.f32 %v1080
    %vm1088 = vmor %vm1086, %vm1087
    %v1089 = vsel %vm1088, %v1080, %v1085
    %v1090 = vmul.f32 %v1056, %v1079
    %v1091 = vmul.f32 %v1057, %v1089
    %v1092 = vld [vmem:[%s8] sm:$0x1]
    %v1094 = vperm.slane %v1092, 0
    %v1096 = vmul.f32 %v1090, %v1094
    %v1097 = vmul.f32 %v1091, %v1094
    %v1098 = vld [vmem:[%s5] sm:$0xff]
    %v1099 = vld [vmem:[%s5 + $0x8] sm:$0xff]
    %v1100 = vld [vmem:[%s5 + $0x10] sm:$0xff]
    %v1101 = vld [vmem:[%s5 + $0x18] sm:$0xff]
    %v1103 = vsel %vm43, %v1096, 0
    %v1106 = vsel %vm43, %v1097, 0
    %1108 = vmatpush.msra.mxu0 0.0
    %1109 = vmatpush.msra.mxu0 0.0
    %1110 = vmatpush.msra.mxu0 0.0
    %1111 = vmatpush.msra.mxu0 0.0
    %1112 = vmatpush.msra.mxu0 0.0
    %1113 = vmatpush.msra.mxu0 0.0
    %1114 = vmatpush.msra.mxu0 0.0
    %1115 = vmatpush.msra.mxu0 0.0
    %1116 = vmatpush.msra.mxu0 0.0
    %1117 = vmatpush.msra.mxu0 0.0
    %1118 = vmatpush.msra.mxu0 0.0
    %1119 = vmatpush.msra.mxu0 0.0
    %1120 = vmatpush.msra.mxu0 %v1101
    %1121 = vmatpush.msra.mxu0 %v1100
    %1122 = vmatpush.msra.mxu0 %v1099
    %1123 = vmatpush.msra.mxu0 %v1098
    %1124 = vmatmul.f32.gmra.mxu0 %v1103
    %v1125 = vpop.f32.mrf.mxu0
    %v1126 = vadd.f32 0.0, %v1125
    %1127 = vmatmul.f32.gmra.mxu0 %v1106
    %v1128 = vpop.f32.mrf.mxu0
    %v1129 = vadd.f32 0.0, %v1128
    %1130 = vdwg.mxu0
    %v1131 = vmax.f32 %v1126, 0.0
    %v1132 = vmax.f32 %v1129, 0.0
    %v1133 = vld [vmem:[%s6] sm:$0xff]
    %v1134 = vld [vmem:[%s6 + $0x8] sm:$0xff]
    %v1135 = vld [vmem:[%s6 + $0x10] sm:$0xff]
    %v1136 = vld [vmem:[%s6 + $0x18] sm:$0xff]
    %v1137 = vld [vmem:[%s6 + $0x20] sm:$0xff]
    %v1138 = vld [vmem:[%s6 + $0x28] sm:$0xff]
    %v1139 = vld [vmem:[%s6 + $0x30] sm:$0xff]
    %v1140 = vld [vmem:[%s6 + $0x38] sm:$0xff]
    %vm1141 = vcmask 523264
    %v1143 = vsel %vm1141, %v1131, 0
    %v1146 = vsel %vm1141, %v1132, 0
    %1148 = vmatpush.msra.mxu0 0.0
    %1149 = vmatpush.msra.mxu0 0.0
    %1150 = vmatpush.msra.mxu0 0.0
    %1151 = vmatpush.msra.mxu0 0.0
    %1152 = vmatpush.msra.mxu0 0.0
    %1153 = vmatpush.msra.mxu0 0.0
    %1154 = vmatpush.msra.mxu0 0.0
    %1155 = vmatpush.msra.mxu0 0.0
    %1156 = vmatpush.msra.mxu0 %v1140
    %1157 = vmatpush.msra.mxu0 %v1139
    %1158 = vmatpush.msra.mxu0 %v1138
    %1159 = vmatpush.msra.mxu0 %v1137
    %1160 = vmatpush.msra.mxu0 %v1136
    %1161 = vmatpush.msra.mxu0 %v1135
    %1162 = vmatpush.msra.mxu0 %v1134
    %1163 = vmatpush.msra.mxu0 %v1133
    %1164 = vmatmul.f32.gmra.mxu0 %v1143
    %v1165 = vpop.f32.mrf.mxu0
    %v1166 = vadd.f32 0.0, %v1165
    %1167 = vmatmul.f32.gmra.mxu0 %v1146
    %v1168 = vpop.f32.mrf.mxu0
    %v1169 = vadd.f32 0.0, %v1168
    %1170 = vdwg.mxu0
    %v1171 = vadd.f32 %v1056, %v1166
    %v1172 = vadd.f32 %v1057, %v1169
    %1173 = vst.msk [vmem:[#allocation2] sm:$0xff] %vm43, %v1171
    %1174 = vst.msk [vmem:[#allocation2 + $0x8] sm:$0xff] %vm43, %v1172
    // Predicated region
    $region38: #{tpu_custom_call.1} parent=1 // pred_check
      _
    $region39: #{tpu_custom_call.1} parent=1 // pred_check_branch
      %1176 = sbr.rel (0) target = $region41
    $region40: #{tpu_custom_call.1} parent=1 // pred_region
      %1178 = vsyncadd [#allocation3], 0
      %s1179 = sshll.u32 [#allocation2], 4
      %s1180 = int_to_ptr.vmem [resolvable:$true] %s1179
      %s1181 = sshll.u32 %s9, 4
      %s1182 = int_to_ptr.hbm [resolvable:$true] %s1181
      %1187 = dma.vmem_to_hbm [thread:$0]  %s1180, 256, %s1182, [#allocation3], 128, 128, 8
    $region41: #{tpu_custom_call.1} parent=1 // pred_fallthru
      _
    // Predicated region
    $region42: #{tpu_custom_call.1} parent=1 // pred_check
      _
    $region43: #{tpu_custom_call.1} parent=1 // pred_check_branch
      %1189 = sbr.rel (0) target = $region45
    $region44: #{tpu_custom_call.1} parent=1 // pred_region
      %1191 = dma.done [#allocation3], 256
    $region45: #{tpu_custom_call.1} parent=1 // pred_fallthru
      _
    %1192 = vsyncpa [#allocation3], 1

</llo_original>
